<compile_context>
chip_gen: v7x
topology: tpu7x:2x2x1
jax: 0.10.0
libtpu: 0.0.40
codegen_flags: <defaults>
</compile_context>

<pallas_src>
import functools

import jax
import jax.numpy as jnp
from jax.experimental import pallas as pl
from jax.experimental.pallas import tpu as pltpu


# ---------------------------------------------------------------------------
# VMEM budgeting
# ---------------------------------------------------------------------------

def _physical_vmem_bytes():
    """Per-core VMEM capacity; conservative 64 MiB (v7x floor) if unknown."""
    try:
        info = pltpu.get_tpu_info()
        cap = int(getattr(info, "vmem_capacity_bytes", 0))
        if cap > 0:
            return cap
    except Exception:
        pass
    return 64 * 1024 * 1024


def _pick_batch_block(n, c, per_batch_slab_bytes, budget):
    """Batches per grid step for the fused path.

    Fill the 8-sublane vreg rows when C is small, but (a) stay inside the VMEM
    budget (double-buffered in + out) and (b) keep >= 2 parallel grid steps so
    both v7x TensorCores get work.
    """
    per_batch = 4 * per_batch_slab_bytes          # ~2 input + 2 output pipeline copies
    target_rows = max(1, -(-8 // c))              # ceil(8 / C)
    best = 1
    for d in range(2, n + 1):
        if n % d or d > target_rows:
            continue
        if d * per_batch > budget:
            continue
        if n // d < 2:
            continue                              # keep v7x megacore busy
        best = d
    return best


def _channel_mix(pooled, w, b):
    """attn[n, o] = sum_c w[o, c] * pooled[n, c] + b[o]  (pooled: (NB, C), f32)."""
    c = pooled.shape[1]
    if c <= 128:
        # Small C: VPU broadcast + XLU lane reduce; avoid a 1-wide MXU matmul.
        attn = jnp.sum(w[None, :, :] * pooled[:, None, :], axis=2)
    else:
        attn = jax.lax.dot_general(pooled, w, (((1,), (1,)), ((), ())),
                                   preferred_element_type=jnp.float32)
    return attn + b                                # b: (1, C)


# ---------------------------------------------------------------------------
# Fast path: whole (NB, C, HW) slab resident -> fused pool + mix + multiply
# ---------------------------------------------------------------------------

def _ca_fused_kernel(x_ref, w_ref, b_ref, o_ref):
    # x_ref/o_ref: (NB, C, HW); w_ref: (C, C) pre-scaled by 1/HW; b_ref: (1, C)
    x = x_ref[...]
    pooled = jnp.sum(x.astype(jnp.float32), axis=2)        # (NB, C); 1/HW folded into W
    attn = _channel_mix(pooled, w_ref[...], b_ref[...])     # (NB, C) f32
    # Multiply in the input dtype (matches torch's x * conv(pool(x)) precision
    # and avoids a second full-slab f32 temporary for bf16 inputs).
    o_ref[...] = (x * attn.astype(x.dtype)[:, :, None]).astype(o_ref.dtype)


def _ca_block_fused(x_flat, w_scaled, b_row, tile_budget, vmem_limit):
    n, c, hw = x_flat.shape
    itemsize = max(x_flat.dtype.itemsize, 4)
    nb = _pick_batch_block(n, c, c * hw * itemsize, tile_budget)
    grid = (n // nb,)

    cost = pl.CostEstimate(
        flops=2 * n * c * hw + 2 * n * c * c,
        transcendentals=0,
        bytes_accessed=2 * n * c * hw * x_flat.dtype.itemsize + c * c * 4 + c * 4,
    )
    return pl.pallas_call(
        _ca_fused_kernel,
        out_shape=jax.ShapeDtypeStruct((n, c, hw), x_flat.dtype),
        grid_spec=pltpu.PrefetchScalarGridSpec(
            num_scalar_prefetch=0,
            grid=grid,
            in_specs=[
                pl.BlockSpec((nb, c, hw), lambda i: (i, 0, 0)),
                pl.BlockSpec((c, c), lambda i: (0, 0)),
                pl.BlockSpec((1, c), lambda i: (0, 0)),
            ],
            out_specs=pl.BlockSpec((nb, c, hw), lambda i: (i, 0, 0)),
        ),
        compiler_params=pltpu.CompilerParams(
            dimension_semantics=("parallel",),
            vmem_limit_bytes=vmem_limit,
        ),
        cost_estimate=cost,
    )(x_flat, w_scaled, b_row)


# ---------------------------------------------------------------------------
# Fallback: HW-tiled two-phase pipeline (bounded VMEM for large feature maps)
# ---------------------------------------------------------------------------

def _ca_attn_kernel(x_ref, w_ref, b_ref, attn_ref, *, hw, tile):
    # x_ref: (1, C, tile); attn_ref: (1, C, 1) resident accumulator across HW tiles.
    t = pl.program_id(1)

    @pl.when(t == 0)
    def _():
        attn_ref[...] = jnp.zeros_like(attn_ref)

    x = x_ref[...].astype(jnp.float32)
    if hw % tile != 0:
        # Mask the padded lanes of the last (partial) tile out of the reduction.
        col = jax.lax.broadcasted_iota(jnp.int32, x.shape, 2) + t * tile
        x = jnp.where(col < hw, x, 0.0)
    attn_ref[...] += jnp.sum(x, axis=2, keepdims=True)   # running spatial sum

    @pl.when(t == pl.num_programs(1) - 1)
    def _():
        pooled = attn_ref[...][:, :, 0]                  # (1, C)
        attn = _channel_mix(pooled, w_ref[...], b_ref[...])
        attn_ref[...] = attn[:, :, None]


def _ca_scale_kernel(x_ref, attn_ref, o_ref):
    # x_ref/o_ref: (1, C, tile); attn_ref: (1, C, 1) f32
    x = x_ref[...]
    o_ref[...] = (x * attn_ref[...].astype(x.dtype)).astype(o_ref.dtype)


def _ca_block_two_phase(x_flat, w_scaled, b_row, tile_budget, vmem_limit,
                        force_tile=None):
    n, c, hw = x_flat.shape
    itemsize = max(x_flat.dtype.itemsize, 4)

    if force_tile is not None:
        tile = int(force_tile)
    else:
        # Largest lane tile (multiple of 128) whose pipelined buffers fit.
        max_t = tile_budget // (4 * c * itemsize)
        tile = max(128, (max_t // 128) * 128)
    hw_padded = -(-hw // 128) * 128
    tile = min(tile, hw_padded)
    n_tiles = pl.cdiv(hw, tile)

    attn = pl.pallas_call(
        functools.partial(_ca_attn_kernel, hw=hw, tile=tile),
        out_shape=jax.ShapeDtypeStruct((n, c, 1), jnp.float32),
        grid_spec=pltpu.PrefetchScalarGridSpec(
            num_scalar_prefetch=0,
            grid=(n, n_tiles),
            in_specs=[
                pl.BlockSpec((1, c, tile), lambda i, t: (i, 0, t)),
                pl.BlockSpec((c, c), lambda i, t: (0, 0)),
                pl.BlockSpec((1, c), lambda i, t: (0, 0)),
            ],
            out_specs=pl.BlockSpec((1, c, 1), lambda i, t: (i, 0, 0)),
        ),
        compiler_params=pltpu.CompilerParams(
            dimension_semantics=("parallel", "arbitrary"),
            vmem_limit_bytes=vmem_limit,
        ),
        cost_estimate=pl.CostEstimate(
            flops=n * c * hw + 2 * n * c * c,
            transcendentals=0,
            bytes_accessed=n * c * hw * x_flat.dtype.itemsize + c * c * 4 + n * c * 4,
        ),
    )(x_flat, w_scaled, b_row)

    out = pl.pallas_call(
        _ca_scale_kernel,
        out_shape=jax.ShapeDtypeStruct((n, c, hw), x_flat.dtype),
        grid_spec=pltpu.PrefetchScalarGridSpec(
            num_scalar_prefetch=0,
            grid=(n, n_tiles),
            in_specs=[
                pl.BlockSpec((1, c, tile), lambda i, t: (i, 0, t)),
                pl.BlockSpec((1, c, 1), lambda i, t: (i, 0, 0)),
            ],
            out_specs=pl.BlockSpec((1, c, tile), lambda i, t: (i, 0, t)),
        ),
        compiler_params=pltpu.CompilerParams(
            dimension_semantics=("parallel", "parallel"),
            vmem_limit_bytes=vmem_limit,
        ),
        cost_estimate=pl.CostEstimate(
            flops=n * c * hw,
            transcendentals=0,
            bytes_accessed=2 * n * c * hw * x_flat.dtype.itemsize + n * c * 4,
        ),
    )(x_flat, attn)
    return out


# ---------------------------------------------------------------------------
# Public wrapper
# ---------------------------------------------------------------------------

def ca_block(x, weight, bias, *, force_two_phase=False, force_tile=None):
    """x: (N, C, H, W); weight: (C, C) from Conv2d(C, C, 1); bias: (C,)."""
    n, c, h, w = x.shape
    hw = h * w
    x_flat = x.reshape(n, c, hw)

    # Fold the 1/HW mean factor into the conv weight so the kernel only sums.
    w_scaled = weight.astype(jnp.float32) * (1.0 / float(hw))
    b_row = bias.astype(jnp.float32).reshape(1, c)

    vmem_cap = _physical_vmem_bytes()
    vmem_limit = min((vmem_cap // 4) * 3, 100 * 1024 * 1024)   # explicit scoped limit
    tile_budget = (vmem_limit // 5) * 4                        # headroom for scratch

    itemsize = max(x_flat.dtype.itemsize, 4)
    slab_bytes = 4 * c * hw * itemsize + c * c * 4             # 2 in + 2 out copies + W

    if (not force_two_phase) and slab_bytes <= tile_budget:
        out_flat = _ca_block_fused(x_flat, w_scaled, b_row, tile_budget, vmem_limit)
    else:
        out_flat = _ca_block_two_phase(x_flat, w_scaled, b_row, tile_budget,
                                       vmem_limit, force_tile=force_tile)
    return out_flat.reshape(n, c, h, w)


def _reference(x, weight, bias):
    pooled = jnp.mean(x, axis=(2, 3))                          # (N, C)
    attn = pooled @ weight.T + bias                            # (N, C)
    return x * attn[:, :, None, None]


if __name__ == "__main__":
    key = jax.random.PRNGKey(0)
    kx, kw, kb = jax.random.split(key, 3)

    # Small demo shape (exercises the fused fast path).
    N, C, H, W = 2, 4, 16, 16
    x = jax.random.normal(kx, (N, C, H, W), dtype=jnp.float32)
    weight = jax.random.normal(kw, (C, C), dtype=jnp.float32) * 0.1
    bias = jax.random.normal(kb, (C,), dtype=jnp.float32) * 0.1

    out = jax.block_until_ready(ca_block(x, weight, bias))
    ref = _reference(x, weight, bias)
    assert out.shape == (N, C, H, W)
    assert jnp.allclose(out, ref, atol=1e-5, rtol=1e-5), "fused path mismatch"

    # Exercise the large-feature-map fallback (two-phase, HW-tiled with a
    # partial/masked last tile) at a small shape by forcing it.
    N2, C2, H2, W2 = 2, 8, 24, 24
    x2 = jax.random.normal(kx, (N2, C2, H2, W2), dtype=jnp.float32)
    w2 = jax.random.normal(kw, (C2, C2), dtype=jnp.float32) * 0.1
    b2 = jax.random.normal(kb, (C2,), dtype=jnp.float32) * 0.1
    out2 = jax.block_until_ready(
        ca_block(x2, w2, b2, force_two_phase=True, force_tile=128))
    ref2 = _reference(x2, w2, b2)
    assert jnp.allclose(out2, ref2, atol=1e-5, rtol=1e-5), "two-phase path mismatch"

    print("KERNEL_OK")
</pallas_src>

<mosaic_0001>
module attributes {stable_mosaic.version = 11 : i64} {
  func.func @_ca_fused_kernel(%arg0: i32, %arg1: memref<1x4x256xf32, #tpu.memory_space<vmem>>, %arg2: memref<4x4xf32, #tpu.memory_space<vmem>>, %arg3: memref<1x4xf32, #tpu.memory_space<vmem>>, %arg4: memref<1x4x256xf32, #tpu.memory_space<vmem>>) attributes {dimension_semantics = [#tpu.dimension_semantics<parallel>], iteration_bounds = array<i64: 2>, scalar_prefetch = 0 : i64, scratch_operands = 0 : i64, tpu.core_type = #tpu.core_type<tc>, window_params = [{transform_indices = @transform_0, window_bounds = array<i64: 1, 4, 256>}, {pipeline_mode = #tpu.pipeline_mode<synchronous>, transform_indices = @transform_1, window_bounds = array<i64: 4, 4>}, {pipeline_mode = #tpu.pipeline_mode<synchronous>, transform_indices = @transform_2, window_bounds = array<i64: 1, 4>}, {transform_indices = @transform_3, window_bounds = array<i64: 1, 4, 256>}]} {
    %c0 = arith.constant 0 : index
    %c0_0 = arith.constant 0 : index
    %c0_1 = arith.constant 0 : index
    %0 = vector.load %arg1[%c0, %c0_0, %c0_1] : memref<1x4x256xf32, #tpu.memory_space<vmem>>, vector<1x4x256xf32>
    %cst = arith.constant dense<0.000000e+00> : vector<1x4xf32>
    %1 = vector.multi_reduction <add>, %0, %cst [2] : vector<1x4x256xf32> to vector<1x4xf32>
    %c0_2 = arith.constant 0 : index
    %c0_3 = arith.constant 0 : index
    %2 = vector.load %arg2[%c0_2, %c0_3] : memref<4x4xf32, #tpu.memory_space<vmem>>, vector<4x4xf32>
    %c0_4 = arith.constant 0 : index
    %c0_5 = arith.constant 0 : index
    %3 = vector.load %arg3[%c0_4, %c0_5] : memref<1x4xf32, #tpu.memory_space<vmem>>, vector<1x4xf32>
    %4 = vector.shape_cast %2 : vector<4x4xf32> to vector<1x4x4xf32>
    %5 = vector.shape_cast %1 : vector<1x4xf32> to vector<1x1x4xf32>
    %6 = vector.broadcast %5 : vector<1x1x4xf32> to vector<1x4x4xf32>
    %7 = arith.mulf %4, %6 : vector<1x4x4xf32>
    %cst_6 = arith.constant dense<0.000000e+00> : vector<1x4xf32>
    %8 = vector.multi_reduction <add>, %7, %cst_6 [2] : vector<1x4x4xf32> to vector<1x4xf32>
    %9 = arith.addf %8, %3 : vector<1x4xf32>
    %10 = vector.shape_cast %9 : vector<1x4xf32> to vector<1x4x1xf32>
    %11 = vector.broadcast %10 : vector<1x4x1xf32> to vector<1x4x256xf32>
    %12 = arith.mulf %0, %11 : vector<1x4x256xf32>
    %c0_7 = arith.constant 0 : index
    %c0_8 = arith.constant 0 : index
    %c0_9 = arith.constant 0 : index
    %13 = vector.load %arg4[%c0_7, %c0_8, %c0_9] : memref<1x4x256xf32, #tpu.memory_space<vmem>>, vector<1x4x256xf32>
    tpu.vector_store %arg4[%c0_7, %c0_8, %c0_9], %12 {strides = array<i32>} : memref<1x4x256xf32, #tpu.memory_space<vmem>>, vector<1x4x256xf32>,
    return
  }
  func.func @transform_0(%arg0: i32) -> (i32, i32, i32) {
    %c0_i32 = arith.constant 0 : i32
    %c0_i32_0 = arith.constant 0 : i32
    %c0_i32_1 = arith.constant 0 : i32
    return %arg0, %c0_i32, %c0_i32_0 : i32, i32, i32
  }
  func.func @transform_1(%arg0: i32) -> (i32, i32) {
    %c0_i32 = arith.constant 0 : i32
    %c0_i32_0 = arith.constant 0 : i32
    %c0_i32_1 = arith.constant 0 : i32
    return %c0_i32, %c0_i32_0 : i32, i32
  }
  func.func @transform_2(%arg0: i32) -> (i32, i32) {
    %c0_i32 = arith.constant 0 : i32
    %c0_i32_0 = arith.constant 0 : i32
    %c0_i32_1 = arith.constant 0 : i32
    return %c0_i32, %c0_i32_0 : i32, i32
  }
  func.func @transform_3(%arg0: i32) -> (i32, i32, i32) {
    %c0_i32 = arith.constant 0 : i32
    %c0_i32_0 = arith.constant 0 : i32
    %c0_i32_1 = arith.constant 0 : i32
    return %arg0, %c0_i32, %c0_i32_0 : i32, i32, i32
  }
}

</mosaic_0001>

<llo_original>
// kernel: tpu_custom_call.1
$region0: #{tpu_custom_call.1}
  #allocation0 [shape = 'u32[]', space=smem, size = 0x4, offset = 0x4, fixed_abs, tag = 'smem constant byte address 0x4 - core index']
  #allocation1 [shape = 'u32[144,128]{1,0:T(1,128)}', space=vmem, size = 0x12000, scoped, tag = 'internal scratch']
  %s0 = inlined_call_operand.hbm [shape: f32[2,4,256], index: 0, kind: input, shape index: {}]
  %s1 = inlined_call_operand.hbm [shape: f32[4,4], index: 1, kind: input, shape index: {}]
  %s2 = inlined_call_operand.vmem [shape: f32[1,4], index: 2, kind: input, shape index: {}]
  %s3 = inlined_call_operand.hbm [shape: f32[2,4,256], index: 3, kind: output, shape index: {}]
  %s4 = sld [smem:[#allocation0]]
  $region53: #{tpu_custom_call.1} parent=0
    _
  %s6 = ssub.s32 1, %s4
  %s7 = scalar_select 0, %s6, %s4
  $region1: #{tpu_custom_call.1} parent=0
    #allocation2 [shape = 'u8[8192]{0}', space=vmem, size = 0x2000, scoped, tag = 'input window, operand 0']
    #allocation3 [shape = 's32[2]{0}', space=sflag, size = 0x8, scoped, tag = 'scoped memory for tpu_custom_call.1']
    #allocation4 [shape = 's32[2]{0}', space=sflag, size = 0x8, scoped, tag = 'scoped memory for tpu_custom_call.1']
    #allocation5 [shape = 'u8[2048]{0}', space=vmem, size = 0x800, scoped, tag = 'input window, operand 1, single buffered']
    #allocation6 [shape = 's32[1]{0}', space=sflag, size = 0x4, scoped, tag = 'scoped memory for tpu_custom_call.1']
    #allocation7 [shape = 'u8[8192]{0}', space=vmem, size = 0x2000, scoped, tag = 'output window, operand 0']
    %8 = vsyncpa [#allocation3], 0
    %s9 = scalar_lea.sflag [#allocation3], 1
    %10 = vsyncpa %s9, 0
    %11 = vsyncpa [#allocation6], 0
    %12 = vsyncpa [#allocation4], 0
    %s13 = scalar_lea.sflag [#allocation4], 1
    %14 = vsyncpa %s13, 0
    loop: start=0, step=1, limit=4
    $region2: #{tpu_custom_call.1} parent=1 // loop_pre_header
      _
    $region3: #{tpu_custom_call.1} parent=1 // loop_header
      %s16 = sphi 0, %s20
      %p17 = scmp.ge.s32.totalorder %s16, 4
      %s26 = sphi 0, %s28
      %s29 = sphi 0, %s26
      %s30 = sphi 0, %s29
      %s46 = sphi 0, %s30
      %s50 = sphi 0, %s50
      %s52 = sphi 0, %s50
      %s53 = sphi 0, %s52
      %s67 = sphi 0, %s53
      %s71 = sphi 0, %s71
      %s73 = sphi 0, %s71
      %s74 = sphi 0, %s73
      %s88 = sphi 0, %s74
      %s94 = sphi 0, %s96
      %s97 = sphi 0, %s94
      %s98 = sphi 0, %s97
      %s114 = sphi 0, %s98
    $region4: #{tpu_custom_call.1} parent=1 // loop_header_branch
      %19 = sbr.rel (%p17) target = $region8
    $region5: #{tpu_custom_call.1} parent=1 // loop_body
      %s21 = ssub.s32 %s16, 1
      %s22 = ssub.s32 %s16, 2
      %s23 = sadd.s32 %s16, 1
      %s24 = ssub.s32 %s16, %s23
      %p25 = scmp.eq.s32.totalorder %s24, 0
      %s27 = sadd.s32 %s26, 1
      %s28 = scalar_select %p25, %s26, %s27
      %p31 = pneg %p25
      %p32 = scmp.eq.s32.totalorder %s16, 1
      %p33 = por %p31, %p32
      %p34 = scmp.ne.s32.totalorder %s26, %s29
      %p35 = scmp.eq.s32.totalorder %s16, 0
      %p36 = por %p34, %p35
      %p37 = scmp.ne.s32.totalorder %s26, %s29
      %p38 = scmp.eq.s32.totalorder %s21, 1
      %p39 = por %p37, %p38
      %p40 = scmp.ne.s32.totalorder %s29, %s30
      %p41 = scmp.eq.s32.totalorder %s21, 0
      %p42 = por %p40, %p41
      %p43 = scmp.ne.s32.totalorder %s29, %s30
      %p44 = scmp.eq.s32.totalorder %s22, 1
      %p45 = por %p43, %p44
      %p47 = scmp.ne.s32.totalorder %s30, %s46
      %p48 = scmp.eq.s32.totalorder %s22, 0
      %p49 = por %p47, %p48
      %s51 = sadd.s32 %s50, 1
      %p54 = scmp.eq.s32.totalorder %s16, 1
      %p55 = scmp.ne.s32.totalorder %s50, %s52
      %p56 = scmp.eq.s32.totalorder %s16, 0
      %p57 = por %p55, %p56
      %p58 = scmp.ne.s32.totalorder %s50, %s52
      %p59 = scmp.eq.s32.totalorder %s21, 1
      %p60 = por %p58, %p59
      %p61 = scmp.ne.s32.totalorder %s52, %s53
      %p62 = scmp.eq.s32.totalorder %s21, 0
      %p63 = por %p61, %p62
      %p64 = scmp.ne.s32.totalorder %s52, %s53
      %p65 = scmp.eq.s32.totalorder %s22, 1
      %p66 = por %p64, %p65
      %p68 = scmp.ne.s32.totalorder %s53, %s67
      %p69 = scmp.eq.s32.totalorder %s22, 0
      %p70 = por %p68, %p69
      %s72 = sadd.s32 %s71, 1
      %p75 = scmp.eq.s32.totalorder %s16, 1
      %p76 = scmp.ne.s32.totalorder %s71, %s73
      %p77 = scmp.eq.s32.totalorder %s16, 0
      %p78 = por %p76, %p77
      %p79 = scmp.ne.s32.totalorder %s71, %s73
      %p80 = scmp.eq.s32.totalorder %s21, 1
      %p81 = por %p79, %p80
      %p82 = scmp.ne.s32.totalorder %s73, %s74
      %p83 = scmp.eq.s32.totalorder %s21, 0
      %p84 = por %p82, %p83
      %p85 = scmp.ne.s32.totalorder %s73, %s74
      %p86 = scmp.eq.s32.totalorder %s22, 1
      %p87 = por %p85, %p86
      %p89 = scmp.ne.s32.totalorder %s74, %s88
      %p90 = scmp.eq.s32.totalorder %s22, 0
      %p91 = por %p89, %p90
      %s92 = ssub.s32 %s16, %s23
      %p93 = scmp.eq.s32.totalorder %s92, 0
      %s95 = sadd.s32 %s94, 1
      %s96 = scalar_select %p93, %s94, %s95
      %p99 = pneg %p93
      %p100 = scmp.eq.s32.totalorder %s16, 1
      %p101 = por %p99, %p100
      %p102 = scmp.ne.s32.totalorder %s94, %s97
      %p103 = scmp.eq.s32.totalorder %s16, 0
      %p104 = por %p102, %p103
      %p105 = scmp.ne.s32.totalorder %s94, %s97
      %p106 = scmp.eq.s32.totalorder %s21, 1
      %p107 = por %p105, %p106
      %p108 = scmp.ne.s32.totalorder %s97, %s98
      %p109 = scmp.eq.s32.totalorder %s21, 0
      %p110 = por %p108, %p109
      %p111 = scmp.ne.s32.totalorder %s97, %s98
      %p112 = scmp.eq.s32.totalorder %s22, 1
      %p113 = por %p111, %p112
      %p115 = scmp.ne.s32.totalorder %s98, %s114
      %p116 = scmp.eq.s32.totalorder %s22, 0
      %p117 = por %p115, %p116
      %p118 = scmp.le.s32.totalorder 1, %s16
      %p119 = scmp.lt.s32.totalorder %s16, 3
      %p120 = pnand %p118, %p119
      %p121 = pneg %p120
      // Predicated region
      $region9: #{tpu_custom_call.1} parent=5 // pred_check
        _
      $region10: #{tpu_custom_call.1} parent=5 // pred_check_branch
        %123 = sbr.rel (%p120) target = $region12
      $region11: #{tpu_custom_call.1} parent=5 // pred_region
        %s124 = ssub.s32 %s16, 1
        // Predicated region
        $region13: #{tpu_custom_call.1} parent=11 // pred_check
          %p125 = pneg %p63
        $region14: #{tpu_custom_call.1} parent=11 // pred_check_branch
          %127 = sbr.rel (%p125) target = $region16
        $region15: #{tpu_custom_call.1} parent=11 // pred_region
          %s129 = ssub.s32 64, 64
          %130 = vsyncadd [#allocation6], %s129
          %s132 = sshll.u32 [#allocation5], 4
          %s133 = int_to_ptr.vmem [resolvable:$true] %s132
          %135 = dma.hbm_to_vmem [thread:$0]  %s1, 64, %s133, [#allocation6]
        $region16: #{tpu_custom_call.1} parent=11 // pred_fallthru
          _
        // Predicated region
        $region17: #{tpu_custom_call.1} parent=11 // pred_check
          %p136 = pneg %p84
        $region18: #{tpu_custom_call.1} parent=11 // pred_check_branch
          %138 = sbr.rel (%p136) target = $region20
        $region19: #{tpu_custom_call.1} parent=11 // pred_region
          _
        $region20: #{tpu_custom_call.1} parent=11 // pred_fallthru
          _
      $region12: #{tpu_custom_call.1} parent=5 // pred_fallthru
        _
      %p139 = scmp.lt.s32.totalorder %s16, 2
      // Predicated region
      $region21: #{tpu_custom_call.1} parent=5 // pred_check
        %p140 = pneg %p139
      $region22: #{tpu_custom_call.1} parent=5 // pred_check_branch
        %142 = sbr.rel (%p140) target = $region24
      $region23: #{tpu_custom_call.1} parent=5 // pred_region
        // Predicated region
        $region25: #{tpu_custom_call.1} parent=23 // pred_check
          %p143 = pneg %p36
        $region26: #{tpu_custom_call.1} parent=23 // pred_check_branch
          %145 = sbr.rel (%p143) target = $region28
        $region27: #{tpu_custom_call.1} parent=23 // pred_region
          %s146 = sand.u32 %s26, 1
          %s147 = scalar_lea.sflag [#allocation3], %s146
          %s148 = sand.u32 %s26, 1
          %s149 = smul.addr %s148, 8
          %s150 = scalar_lea.vmem [#allocation2], %s149
          %s152 = ssub.s32 128, 128
          %153 = vsyncadd %s147, %s152
          %s154 = smul.addr %s16, 2
          %s155 = smul.addr %s154, 64
          %s156 = scalar_lea.hbm %s0, %s155
          %s158 = sshll.u32 %s150, 4
          %s159 = int_to_ptr.vmem [resolvable:$true] %s158
          %161 = dma.hbm_to_vmem [thread:$0]  %s156, 128, %s159, %s147
        $region28: #{tpu_custom_call.1} parent=23 // pred_fallthru
          _
      $region24: #{tpu_custom_call.1} parent=5 // pred_fallthru
        _
      %p162 = scmp.le.s32.totalorder 1, %s16
      %p163 = scmp.lt.s32.totalorder %s16, 3
      %p164 = pnand %p162, %p163
      %p165 = pneg %p164
      // Predicated region
      $region29: #{tpu_custom_call.1} parent=5 // pred_check
        _
      $region30: #{tpu_custom_call.1} parent=5 // pred_check_branch
        %167 = sbr.rel (%p164) target = $region32
      $region31: #{tpu_custom_call.1} parent=5 // pred_region
        %s168 = ssub.s32 %s16, 1
        %s169 = sand.u32 %s29, 1
        %s170 = scalar_lea.sflag [#allocation3], %s169
        %s171 = sand.u32 %s29, 1
        %s172 = smul.addr %s171, 8
        %s173 = scalar_lea.vmem [#allocation2], %s172
        // Predicated region
        $region33: #{tpu_custom_call.1} parent=31 // pred_check
          %p174 = pneg %p42
        $region34: #{tpu_custom_call.1} parent=31 // pred_check_branch
          %176 = sbr.rel (%p174) target = $region36
        $region35: #{tpu_custom_call.1} parent=31 // pred_region
          %177 = dma.done %s170, 128
        $region36: #{tpu_custom_call.1} parent=31 // pred_fallthru
          _
        // Predicated region
        $region37: #{tpu_custom_call.1} parent=31 // pred_check
          %p178 = pneg %p63
        $region38: #{tpu_custom_call.1} parent=31 // pred_check_branch
          %180 = sbr.rel (%p178) target = $region40
        $region39: #{tpu_custom_call.1} parent=31 // pred_region
          %181 = dma.done [#allocation6], 64
        $region40: #{tpu_custom_call.1} parent=31 // pred_fallthru
          _
        %s182 = sand.u32 %s29, 1
        %s183 = scalar_lea.sflag [#allocation3], %s182
        %s184 = sand.u32 %s29, 1
        %s185 = smul.addr %s184, 8
        %s186 = scalar_lea.vmem [#allocation2], %s185
        %p187 = pneg %p42
        %p188 = pneg %p39
        %p189 = pneg %p63
        %p190 = pneg %p60
        %p191 = pneg %p84
        %p192 = pneg %p81
        %p193 = pneg %p110
        %p194 = pneg %p107
        %s195 = sand.u32 %s97, 1
        %s196 = scalar_lea.sflag [#allocation4], %s195
        %s197 = sand.u32 %s97, 1
        %s198 = smul.addr %s197, 8
        %s199 = scalar_lea.vmem [#allocation7], %s198
        %v200 = vld [vmem:[%s173] sm:$0xff]
        %v202 = vcombine.high %v200, %v200
        %vm204 = vcmask 1043456
        %v205 = vsel %vm204, %v200, 0.0
        %v206 = vsel %vm204, %v202, 0.0
        %v207 = vadd.f32 %v205, %v206
        %208 = vadd.xlane.f32.xlu0 %v207
        %v209 = vpop.xlane.xlu0 %208
        %v210 = vld [vmem:[#allocation5] sm:$0xf]
        %v211 = vld [vmem:[%s2] sm:$0x1]
        %v213 = vlaneseq
        %v214 = vand.u32 %v213, 127
        %v215 = vlaneseq
        %v216 = vshrl.u32 %v215, 7
        %v217 = vsub.s32 %v214, %v216
        %v218 = vrot.slane %v209, %v217
        %vm219 = vcmask 1042434
        %v220 = vsel %vm219, %v218, %v218
        %vm221 = vcmask 1043459
        %v222 = vsel %vm221, %v218, %v220
        %v224 = vmul.f32 %v210, %v222
        %vm225 = vcmask 27648
        %v226 = vsel %vm225, %v224, 0.0
        %227 = vadd.xlane.f32.xlu0 %v226
        %v228 = vpop.xlane.xlu0 %227
        %v230 = vlaneseq
        %v231 = vshrl.u32 %v230, 7
        %v232 = vsub.s32 0, %v231
        %v233 = vrot.slane %v211, %v232
        %235 = vbcast.lane.b32.xlu0 %v233, 256
        %v236 = vpop.permute.xlu0 %235
        %v238 = vadd.f32 %v228, %v236
        %240 = vset.pattern.permute.xlu0 0
        %241 = vperm.xlu0 %240, %v238
        %v242 = vpop.permute.xlu0 %241
        %v244 = vunpack.c.l.s4 839922192
        %v245 = vunpack.c.0.s8 %v244
        %v246 = vlaneseq
        %v247 = vshrl.u32 %v246, 7
        %v248 = vsub.s32 %v245, %v247
        %v249 = vrot.slane %v242, %v248
        %v251 = vmul.f32 %v200, %v249
        %252 = vst [vmem:[%s199] sm:$0xff] %v251
        %s253 = sand.u32 %s97, 1
        %s254 = scalar_lea.sflag [#allocation4], %s253
        %s255 = sand.u32 %s97, 1
        %s256 = smul.addr %s255, 8
        %s257 = scalar_lea.vmem [#allocation7], %s256
        // Predicated region
        $region41: #{tpu_custom_call.1} parent=31 // pred_check
          %p258 = pneg %p107
        $region42: #{tpu_custom_call.1} parent=31 // pred_check_branch
          %260 = sbr.rel (%p258) target = $region44
        $region43: #{tpu_custom_call.1} parent=31 // pred_region
          %s262 = ssub.s32 128, 128
          %263 = vsyncadd %s254, %s262
          %s264 = smul.addr %s21, 2
          %s265 = smul.addr %s264, 64
          %s266 = scalar_lea.hbm %s3, %s265
          %s268 = sshll.u32 %s257, 4
          %s269 = int_to_ptr.vmem [resolvable:$true] %s268
          %271 = dma.vmem_to_hbm [thread:$0]  %s269, 128, %s266, %s254
        $region44: #{tpu_custom_call.1} parent=31 // pred_fallthru
          _
      $region32: #{tpu_custom_call.1} parent=5 // pred_fallthru
        _
      %p272 = scmp.le.s32.totalorder 2, %s16
      // Predicated region
      $region45: #{tpu_custom_call.1} parent=5 // pred_check
        %p273 = pneg %p272
      $region46: #{tpu_custom_call.1} parent=5 // pred_check_branch
        %275 = sbr.rel (%p273) target = $region48
      $region47: #{tpu_custom_call.1} parent=5 // pred_region
        %s276 = ssub.s32 %s16, 2
        // Predicated region
        $region49: #{tpu_custom_call.1} parent=47 // pred_check
          %p277 = pneg %p113
        $region50: #{tpu_custom_call.1} parent=47 // pred_check_branch
          %279 = sbr.rel (%p277) target = $region52
        $region51: #{tpu_custom_call.1} parent=47 // pred_region
          %s280 = sand.u32 %s98, 1
          %s281 = scalar_lea.sflag [#allocation4], %s280
          %s282 = sand.u32 %s98, 1
          %s283 = smul.addr %s282, 8
          %s284 = scalar_lea.vmem [#allocation7], %s283
          %285 = dma.done %s281, 128
        $region52: #{tpu_custom_call.1} parent=47 // pred_fallthru
          _
      $region48: #{tpu_custom_call.1} parent=5 // pred_fallthru
        _
    $region6: #{tpu_custom_call.1} parent=1 // loop_footer
      %s20 = sadd.s32 1, %s16
    $region7: #{tpu_custom_call.1} parent=1 // loop_footer_branch
      %15 = sbr.rel target = $region3
    $region8: #{tpu_custom_call.1} parent=1 // loop_exit
      _
    %286 = vsyncpa [#allocation3], 1
    %s287 = scalar_lea.sflag [#allocation3], 1
    %288 = vsyncpa %s287, 1
    %289 = vsyncpa [#allocation6], 1
    %290 = vsyncpa [#allocation4], 1
    %s291 = scalar_lea.sflag [#allocation4], 1
    %292 = vsyncpa %s291, 1

</llo_original>
